<compile_context>
chip_gen: v7x
topology: tpu7x:2x2x1
jax: 0.10.0
libtpu: 0.0.40
codegen_flags: <defaults>
</compile_context>

<pallas_src>
import re
from typing import Dict, NamedTuple, Sequence

import jax
import jax.numpy as jnp
from jax.experimental import pallas as pl
from jax.experimental.pallas import tpu as pltpu


class TokenGroup(NamedTuple):
    tokens: jnp.ndarray
    mask: jnp.ndarray


def regex_match(regex_keys, x):
    return any(re.match(r_key, x) for r_key in regex_keys)


def regex_filter(regex_keys, xs):
    return list(filter(lambda x: regex_match(regex_keys, x), xs))


# ----------------------------------------------------------------------------
# Pallas kernel: last-axis concat of N row-tiles into one full-width tile.
# ----------------------------------------------------------------------------
def _concat_kernel(*refs):
    """refs = (in_0, ..., in_{N-1}, tokens_out).  One full-width store."""
    *in_refs, tok_ref = refs
    if len(in_refs) == 1:
        tok_ref[...] = in_refs[0][...]
    else:
        tok_ref[...] = jnp.concatenate([r[...] for r in in_refs], axis=-1)


def _pad_to_lanes(f: int) -> int:
    """Width a feature dim actually occupies in VMEM (lane = 128)."""
    return ((f + 127) // 128) * 128


def _choose_row_tile(rows: int, feature_sizes, f_total: int, dtype_bytes: int):
    """Pick (row_tile, grid_len) from the *padded* VMEM footprint."""
    # sublane packing: 8 rows for 4-byte, 16 for 2-byte, 32 for 1-byte dtypes
    row_align = 8 * max(1, 4 // dtype_bytes)

    # Padded VMEM bytes per tile-row: every input stream + the output stream,
    # each lane-padded to a multiple of 128 and double-buffered (x2).
    padded_lane_sum = sum(_pad_to_lanes(f) for f in feature_sizes) + _pad_to_lanes(f_total)
    bytes_per_row = 2 * dtype_bytes * padded_lane_sum

    # ~20 MiB of double-buffered streams; leaves headroom inside the 32 MiB
    # scoped limit we request below (safe on v5e/v6e and v7x's 64 MiB VMEM).
    vmem_tile_budget = 20 * 1024 * 1024
    max_tile = max(row_align, (vmem_tile_budget // bytes_per_row) // row_align * row_align)

    if rows <= max_tile:
        return rows, 1                          # single full-extent block (always legal)

    row_tile = max_tile
    if rows % row_align == 0:
        # Prefer a tile that divides rows exactly (no ragged / masked last block),
        # as long as it is not dramatically smaller than the VMEM-limited tile.
        units = rows // row_align
        max_units = max(1, max_tile // row_align)
        best_u, d = 1, 1
        while d * d <= units:
            if units % d == 0:
                for cand in (d, units // d):
                    if cand <= max_units:
                        best_u = max(best_u, cand)
            d += 1
        exact_tile = best_u * row_align
        if exact_tile * 2 >= max_tile:          # big enough -> take the exact divisor
            row_tile = exact_tile

    return row_tile, pl.cdiv(rows, row_tile)


def identity_lowdim_concat(inputs: Sequence[jnp.ndarray]) -> jnp.ndarray:
    """Concatenate inputs (..., F_i) along the last axis -> (..., sum F_i)."""
    assert len(inputs) >= 1
    dtype = inputs[0].dtype
    lead_shape = inputs[0].shape[:-1]
    for x in inputs:
        assert x.dtype == dtype, "all tokenizer inputs must share a dtype"
        assert x.shape[:-1] == lead_shape, "all tokenizer inputs must share leading dims"

    # Single-input fast path: identity, no HBM round trip, no kernel launch.
    if len(inputs) == 1:
        return inputs[0]

    feature_sizes = tuple(int(x.shape[-1]) for x in inputs)
    f_total = sum(feature_sizes)

    rows = 1
    for d in lead_shape:
        rows *= int(d)

    # Flatten leading dims to rows (glue reshape outside the kernel).
    flat = [x.reshape(rows, f) for x, f in zip(inputs, feature_sizes)]

    dtype_bytes = jnp.dtype(dtype).itemsize
    row_tile, grid_len = _choose_row_tile(rows, feature_sizes, f_total, dtype_bytes)

    grid_spec = pl.GridSpec(
        grid=(grid_len,),
        in_specs=[pl.BlockSpec((row_tile, f), lambda i: (i, 0)) for f in feature_sizes],
        out_specs=pl.BlockSpec((row_tile, f_total), lambda i: (i, 0)),
    )

    tokens_flat = pl.pallas_call(
        _concat_kernel,
        grid_spec=grid_spec,
        out_shape=jax.ShapeDtypeStruct((rows, f_total), dtype),
        compiler_params=pltpu.CompilerParams(
            dimension_semantics=("parallel",),        # v7x: shard row tiles over 2 TCs
            vmem_limit_bytes=32 * 1024 * 1024,        # lifts v5e's 16 MiB default; <= v7x 64 MiB
        ),
        # pure copy: read f_total per row, write f_total per row
        cost_estimate=pl.CostEstimate(
            flops=0,
            transcendentals=0,
            bytes_accessed=2 * rows * f_total * dtype_bytes,
        ),
    )(*flat)

    return tokens_flat.reshape(lead_shape + (f_total,))


class IdentityLowdimObsTokenizerJax:
    """JAX/Pallas port of the PyTorch IdentityLowdimObsTokenizer (forward only)."""

    def __init__(self,
                 env_observation_shapes: Dict = {},
                 min_obs: float = -1e-06,
                 max_obs: float = 1e6,
                 obs_stack_keys: Sequence[str] = tuple(),
                 proper_pad_mask: bool = True):
        self.obs_stack_keys = obs_stack_keys
        self.proper_pad_mask = proper_pad_mask
        self.env_observation_shapes = env_observation_shapes
        self.min_obs = min_obs          # TODO(synk): unused in reference forward (no clamping applied)
        self.max_obs = max_obs
        shape0 = env_observation_shapes[obs_stack_keys[0]]
        if len(shape0) == 2:
            self.num_tokens, self.num_features = shape0
        elif len(shape0) == 1:
            self.num_tokens, self.num_features = 1, shape0[0]
        else:
            raise ValueError("Invalid observation shape for IdentityLowdimObsTokenizer")
        # nn.Identity has no parameters -> nothing to initialize.

    def forward(self, observations: Dict[str, jnp.ndarray], tasks=None):
        assert self.obs_stack_keys, "Need to specify observation keys to tokenize."
        if len(regex_filter(self.obs_stack_keys, sorted(observations.keys()))) == 0:
            assert self.proper_pad_mask, "Cannot skip unless using proper pad mask."
            return None

        tokenizer_inputs = []
        for o_key in self.obs_stack_keys:
            for key in filter(re.compile(o_key).match, sorted(observations.keys())):
                assert observations[key].ndim <= 4, (
                    f"Only supports non-spatial inputs but {key} has shape "
                    f"{observations[key].shape}.")
                tokenizer_inputs.append(observations[key])

        tokens = identity_lowdim_concat(tokenizer_inputs)

        if len(self.env_observation_shapes[self.obs_stack_keys[0]]) == 1:
            # matches torch .unsqueeze(2) after concatenation
            tokens = jnp.expand_dims(tokens, 2)

        # constant fill: done by XLA, no VMEM bounce (matches torch.ones f32 default)
        mask = jnp.ones(tokens.shape[:-1], dtype=jnp.float32)
        return TokenGroup(tokens, mask)


if __name__ == "__main__":
    key = jax.random.PRNGKey(0)
    k1, k2, k3, k4, k5, k6 = jax.random.split(key, 6)

    # --- test 1: small shapes (single-block path) -----------------------------
    B, T, F1, F2 = 2, 4, 16, 16
    obs_a = jax.random.normal(k1, (B, T, F1), dtype=jnp.float32)
    obs_b = jax.random.normal(k2, (B, T, F2), dtype=jnp.float32)

    tokenizer = IdentityLowdimObsTokenizerJax(
        env_observation_shapes={"obs_a": (T, F1), "obs_b": (T, F2)},
        obs_stack_keys=("obs_a", "obs_b"),
    )
    out = tokenizer.forward({"obs_a": obs_a, "obs_b": obs_b})
    jax.block_until_ready(out.tokens)
    jax.block_until_ready(out.mask)

    ref_tokens = jnp.concatenate([obs_a, obs_b], axis=-1)
    assert out.tokens.shape == (B, T, F1 + F2)
    assert out.mask.shape == (B, T)
    assert jnp.allclose(out.tokens, ref_tokens)
    assert jnp.allclose(out.mask, jnp.ones((B, T), dtype=jnp.float32))

    # --- test 2: many rows -> multi-step grid with an exactly-dividing tile ----
    B2, T2 = 8, 1024                      # 8192 rows -> grid > 1, no ragged edge
    obs_c = jax.random.normal(k3, (B2, T2, F1), dtype=jnp.float32)
    obs_d = jax.random.normal(k4, (B2, T2, F2), dtype=jnp.float32)
    tok2 = identity_lowdim_concat([obs_c, obs_d])
    jax.block_until_ready(tok2)
    assert tok2.shape == (B2, T2, F1 + F2)
    assert jnp.allclose(tok2, jnp.concatenate([obs_c, obs_d], axis=-1))

    # --- test 3: row count with only tiny divisors -> ragged (masked) edge -----
    B3, T3 = 5, 1640                      # 8200 rows -> max-size tile, ragged last block
    obs_e = jax.random.normal(k5, (B3, T3, F1), dtype=jnp.float32)
    obs_f = jax.random.normal(k6, (B3, T3, F2), dtype=jnp.float32)
    tok3 = identity_lowdim_concat([obs_e, obs_f])
    jax.block_until_ready(tok3)
    assert jnp.allclose(tok3, jnp.concatenate([obs_e, obs_f], axis=-1))

    # --- test 4: single-input fast path + 1-D env obs shape (unsqueeze(2)) -----
    tokenizer_1d = IdentityLowdimObsTokenizerJax(
        env_observation_shapes={"state": (F1,)},
        obs_stack_keys=("state",),
    )
    state = jax.random.normal(k1, (2, 3, F1), dtype=jnp.float32)
    out4 = tokenizer_1d.forward({"state": state})
    jax.block_until_ready(out4.tokens)
    assert out4.tokens.shape == (2, 3, 1, F1)
    assert out4.mask.shape == (2, 3, 1)
    assert jnp.allclose(out4.tokens[:, :, 0, :], state)

    print("KERNEL_OK")
</pallas_src>

<mosaic_0001>
module attributes {stable_mosaic.version = 11 : i64} {
  func.func @_concat_kernel(%arg0: i32, %arg1: memref<8x16xf32, #tpu.memory_space<vmem>>, %arg2: memref<8x16xf32, #tpu.memory_space<vmem>>, %arg3: memref<8x32xf32, #tpu.memory_space<vmem>>) attributes {dimension_semantics = [#tpu.dimension_semantics<parallel>], iteration_bounds = array<i64: 1>, scalar_prefetch = 0 : i64, scratch_operands = 0 : i64, tpu.core_type = #tpu.core_type<tc>, window_params = [{transform_indices = @transform_0, window_bounds = array<i64: 8, 16>}, {transform_indices = @transform_1, window_bounds = array<i64: 8, 16>}, {transform_indices = @transform_2, window_bounds = array<i64: 8, 32>}]} {
    %c0 = arith.constant 0 : index
    %c0_0 = arith.constant 0 : index
    %0 = vector.load %arg1[%c0, %c0_0] : memref<8x16xf32, #tpu.memory_space<vmem>>, vector<8x16xf32>
    %c0_1 = arith.constant 0 : index
    %c0_2 = arith.constant 0 : index
    %1 = vector.load %arg2[%c0_1, %c0_2] : memref<8x16xf32, #tpu.memory_space<vmem>>, vector<8x16xf32>
    %2 = tpu.concatenate %0, %1 in 1 : vector<8x16xf32>, vector<8x16xf32> -> vector<8x32xf32>
    %c0_3 = arith.constant 0 : index
    %c0_4 = arith.constant 0 : index
    %3 = vector.load %arg3[%c0_3, %c0_4] : memref<8x32xf32, #tpu.memory_space<vmem>>, vector<8x32xf32>
    tpu.vector_store %arg3[%c0_3, %c0_4], %2 {strides = array<i32>} : memref<8x32xf32, #tpu.memory_space<vmem>>, vector<8x32xf32>,
    return
  }
  func.func @transform_0(%arg0: i32) -> (i32, i32) {
    %c0_i32 = arith.constant 0 : i32
    %c0_i32_0 = arith.constant 0 : i32
    return %arg0, %c0_i32 : i32, i32
  }
  func.func @transform_1(%arg0: i32) -> (i32, i32) {
    %c0_i32 = arith.constant 0 : i32
    %c0_i32_0 = arith.constant 0 : i32
    return %arg0, %c0_i32 : i32, i32
  }
  func.func @transform_2(%arg0: i32) -> (i32, i32) {
    %c0_i32 = arith.constant 0 : i32
    %c0_i32_0 = arith.constant 0 : i32
    return %arg0, %c0_i32 : i32, i32
  }
}

</mosaic_0001>

<llo_original>
// kernel: tpu_custom_call.1
$region0: #{tpu_custom_call.1}
  #allocation0 [shape = 'u32[]', space=smem, size = 0x4, offset = 0x4, fixed_abs, tag = 'smem constant byte address 0x4 - core index']
  #allocation1 [shape = 'u32[144,128]{1,0:T(1,128)}', space=vmem, size = 0x12000, scoped, tag = 'internal scratch']
  %s0 = inlined_call_operand.hbm [shape: f32[8,16], index: 0, kind: input, shape index: {}]
  %s1 = inlined_call_operand.hbm [shape: f32[8,16], index: 1, kind: input, shape index: {}]
  %s2 = inlined_call_operand.hbm [shape: f32[8,32], index: 2, kind: output, shape index: {}]
  %s3 = sld [smem:[#allocation0]]
  $region26: #{tpu_custom_call.1} parent=0
    _
  %s5 = ssub.s32 1, %s3
  %s6 = scalar_select 0, %s5, %s3
  $region1: #{tpu_custom_call.1} parent=0
    #allocation2 [shape = 'u8[4096]{0}', space=vmem, size = 0x1000, scoped, tag = 'input window, operand 0, single buffered']
    #allocation3 [shape = 's32[1]{0}', space=sflag, size = 0x4, scoped, tag = 'scoped memory for tpu_custom_call.1']
    #allocation4 [shape = 's32[1]{0}', space=sflag, size = 0x4, scoped, tag = 'scoped memory for tpu_custom_call.1']
    #allocation5 [shape = 'u8[4096]{0}', space=vmem, size = 0x1000, scoped, tag = 'input window, operand 1, single buffered']
    #allocation6 [shape = 's32[1]{0}', space=sflag, size = 0x4, scoped, tag = 'scoped memory for tpu_custom_call.1']
    #allocation7 [shape = 'u8[4096]{0}', space=vmem, size = 0x1000, scoped, tag = 'output window, operand 0, single buffered']
    %7 = vsyncpa [#allocation3], 0
    %8 = vsyncpa [#allocation6], 0
    %9 = vsyncpa [#allocation4], 0
    // Predicated region
    $region2: #{tpu_custom_call.1} parent=1 // pred_check
      _
    $region3: #{tpu_custom_call.1} parent=1 // pred_check_branch
      %11 = sbr.rel (0) target = $region5
    $region4: #{tpu_custom_call.1} parent=1 // pred_region
      %s13 = ssub.s32 128, 128
      %14 = vsyncadd [#allocation3], %s13
      %s16 = sshll.u32 [#allocation2], 4
      %s17 = int_to_ptr.vmem [resolvable:$true] %s16
      %19 = dma.hbm_to_vmem [thread:$0]  %s0, 128, %s17, [#allocation3]
    $region5: #{tpu_custom_call.1} parent=1 // pred_fallthru
      _
    // Predicated region
    $region6: #{tpu_custom_call.1} parent=1 // pred_check
      _
    $region7: #{tpu_custom_call.1} parent=1 // pred_check_branch
      %21 = sbr.rel (0) target = $region9
    $region8: #{tpu_custom_call.1} parent=1 // pred_region
      %s23 = ssub.s32 128, 128
      %24 = vsyncadd [#allocation6], %s23
      %s26 = sshll.u32 [#allocation5], 4
      %s27 = int_to_ptr.vmem [resolvable:$true] %s26
      %29 = dma.hbm_to_vmem [thread:$0]  %s1, 128, %s27, [#allocation6]
    $region9: #{tpu_custom_call.1} parent=1 // pred_fallthru
      _
    // Predicated region
    $region10: #{tpu_custom_call.1} parent=1 // pred_check
      _
    $region11: #{tpu_custom_call.1} parent=1 // pred_check_branch
      %31 = sbr.rel (0) target = $region13
    $region12: #{tpu_custom_call.1} parent=1 // pred_region
      %32 = dma.done [#allocation3], 128
    $region13: #{tpu_custom_call.1} parent=1 // pred_fallthru
      _
    // Predicated region
    $region14: #{tpu_custom_call.1} parent=1 // pred_check
      _
    $region15: #{tpu_custom_call.1} parent=1 // pred_check_branch
      %34 = sbr.rel (0) target = $region17
    $region16: #{tpu_custom_call.1} parent=1 // pred_region
      %35 = dma.done [#allocation6], 128
    $region17: #{tpu_custom_call.1} parent=1 // pred_fallthru
      _
    %v36 = vld [vmem:[#allocation2] sm:$0xff]
    %v37 = vld [vmem:[#allocation5] sm:$0xff]
    %39 = vrot.lane.b32.xlu0 %v37, 16
    %v40 = vpop.permute.xlu0 %39
    %vm42 = vcmask 130048
    %v43 = vsel %vm42, %v36, %v40
    %vm44 = vcmask 261120
    %45 = vst.msk [vmem:[#allocation7] sm:$0xff] %vm44, %v43
    // Predicated region
    $region18: #{tpu_custom_call.1} parent=1 // pred_check
      _
    $region19: #{tpu_custom_call.1} parent=1 // pred_check_branch
      %47 = sbr.rel (0) target = $region21
    $region20: #{tpu_custom_call.1} parent=1 // pred_region
      %s49 = ssub.s32 128, 128
      %50 = vsyncadd [#allocation4], %s49
      %s52 = sshll.u32 [#allocation7], 4
      %s53 = int_to_ptr.vmem [resolvable:$true] %s52
      %55 = dma.vmem_to_hbm [thread:$0]  %s53, 128, %s2, [#allocation4]
    $region21: #{tpu_custom_call.1} parent=1 // pred_fallthru
      _
    // Predicated region
    $region22: #{tpu_custom_call.1} parent=1 // pred_check
      _
    $region23: #{tpu_custom_call.1} parent=1 // pred_check_branch
      %57 = sbr.rel (0) target = $region25
    $region24: #{tpu_custom_call.1} parent=1 // pred_region
      %58 = dma.done [#allocation4], 128
    $region25: #{tpu_custom_call.1} parent=1 // pred_fallthru
      _
    %59 = vsyncpa [#allocation3], 1
    %60 = vsyncpa [#allocation6], 1
    %61 = vsyncpa [#allocation4], 1

</llo_original>
